<compile_context>
chip_gen: v7x
topology: tpu7x:2x2x1
jax: 0.10.0
libtpu: 0.0.40
codegen_flags: <defaults>
</compile_context>

<pallas_src>
import math

import jax
import jax.numpy as jnp
from jax.experimental import pallas as pl
from jax.experimental.pallas import tpu as pltpu


def _round_up(x, m):
    return ((x + m - 1) // m) * m


def attn_gru_kernel(p_ref, g_ref, ucat_ref, bu_ref, hs_ref, h_ref):
    """One (batch-block, timestep) grid step of the AttnGRU recurrence.

    p_ref   : (1, BB, 2*Hp) precomputed [Wr(fact)+bWr+bUr | W(fact)+bW]
    g_ref   : (1, BB, 1)    attention gate for this timestep
    ucat_ref: (Hp, 2*Hp)    fused [Ur^T | U^T], resident across the grid
    bu_ref  : (1, Hp)       bU bias (sits inside r * (U h + bU))
    hs_ref  : (1, BB, Hp)   hidden-state output block for this timestep
    h_ref   : (BB, Hp)      VMEM scratch carrying h across timesteps
    """
    t = pl.program_id(1)
    Hp = hs_ref.shape[-1]

    @pl.when(t == 0)
    def _():
        h_ref[...] = jnp.zeros_like(h_ref)

    h = h_ref[...]
    # Single fused h-dependent matmul on the serial path: (BB,Hp) @ (Hp,2Hp).
    hu = jnp.dot(h, ucat_ref[...], preferred_element_type=jnp.float32)
    p = p_ref[0]                                  # (BB, 2Hp)

    # r = sigmoid(Wr(fact) + bWr + Ur(h) + bUr)
    r = jax.nn.sigmoid(p[:, :Hp] + hu[:, :Hp])
    # h_tilda = tanh(W(fact) + bW + r * (U(h) + bU))
    h_tilda = jnp.tanh(p[:, Hp:] + r * (hu[:, Hp:] + bu_ref[...]))

    g = g_ref[0]                                  # (BB, 1), broadcasts over Hp
    h_new = h + g * (h_tilda - h)                 # == g*h_tilda + (1-g)*h

    hs_ref[0] = h_new
    h_ref[...] = h_new


def attn_gru_forward(D, G, params):
    """D: (batch, seq, input_size) f32, G: (batch, seq) f32.

    Returns (C, hs) with C: (batch, hidden), hs: (batch, seq, hidden),
    matching the PyTorch AttnGRU.forward (C == hs[:, -1]).
    """
    B, S, Din = D.shape
    H = params["U"].shape[0]

    # Padded / blocked sizes: sublane (batch) multiple of 8, lane (hidden) 128.
    Bp = _round_up(B, 8)
    BB = min(Bp, 128)
    Bp = _round_up(Bp, BB)
    nb = Bp // BB
    Hp = _round_up(H, 128)

    D = D.astype(jnp.float32)
    G = G.astype(jnp.float32)

    # ---- hoisted fact projections: ONE big matmul, biases folded in --------
    # nn.Linear: y = x @ W.T + b  -> pre-transpose weights to (in, out).
    w_cat = jnp.concatenate([params["Wr"].T, params["W"].T], axis=1)        # (Din, 2H)
    b_cat = jnp.concatenate([params["bWr"] + params["bUr"], params["bW"]])  # (2H,)
    P = jnp.einsum("bsd,dh->bsh", D, w_cat) + b_cat                         # (B, S, 2H)

    def pad_bsh(x):  # (B, S, H) -> (Bp, S, Hp), zero padding
        return jnp.pad(x, ((0, Bp - B), (0, 0), (0, Hp - H)))

    # Pad each half to Hp so in-kernel slices land on 128-lane boundaries.
    p_pad = jnp.concatenate([pad_bsh(P[..., :H]), pad_bsh(P[..., H:])], axis=-1)
    p_sm = jnp.transpose(p_pad, (1, 0, 2))                                  # (S, Bp, 2Hp)

    g_sm = jnp.transpose(jnp.pad(G, ((0, Bp - B), (0, 0))), (1, 0))[:, :, None]  # (S, Bp, 1)

    # ---- fused, padded hidden-to-hidden weights -----------------------------
    u_r = jnp.pad(params["Ur"].T, ((0, Hp - H), (0, Hp - H)))
    u_w = jnp.pad(params["U"].T, ((0, Hp - H), (0, Hp - H)))
    u_cat = jnp.concatenate([u_r, u_w], axis=1)                             # (Hp, 2Hp)
    bu = jnp.pad(params["bU"], (0, Hp - H))[None, :]                        # (1, Hp)

    grid_spec = pltpu.PrefetchScalarGridSpec(
        num_scalar_prefetch=0,
        grid=(nb, S),                       # batch blocks (parallel), seq (serial)
        in_specs=[
            pl.BlockSpec((1, BB, 2 * Hp), lambda b, t: (t, b, 0)),   # P
            pl.BlockSpec((1, BB, 1), lambda b, t: (t, b, 0)),        # G
            pl.BlockSpec((Hp, 2 * Hp), lambda b, t: (0, 0)),         # U_cat (resident)
            pl.BlockSpec((1, Hp), lambda b, t: (0, 0)),              # bU    (resident)
        ],
        out_specs=pl.BlockSpec((1, BB, Hp), lambda b, t: (t, b, 0)),  # hs
        scratch_shapes=[pltpu.VMEM((BB, Hp), jnp.float32)],           # carried h
    )

    hs_sm = pl.pallas_call(
        attn_gru_kernel,
        out_shape=jax.ShapeDtypeStruct((S, Bp, Hp), jnp.float32),
        grid_spec=grid_spec,
        compiler_params=pltpu.CompilerParams(
            dimension_semantics=("parallel", "arbitrary"),
            vmem_limit_bytes=32 * 1024 * 1024,
        ),
    )(p_sm, g_sm, u_cat, bu)

    hs = jnp.transpose(hs_sm, (1, 0, 2))[:B, :, :H]   # back to (batch, seq, hidden)
    C = hs[:, -1, :]                                  # last hidden state == C
    return C, hs


def init_params(key, input_size, hidden_size):
    """Deterministic init mirroring the PyTorch module's __init__ shapes."""
    ks = jax.random.split(key, 8)

    def xavier_normal(k, out_f, in_f):
        std = math.sqrt(2.0 / (in_f + out_f))
        return std * jax.random.normal(k, (out_f, in_f), jnp.float32)

    def linear_bias(k, in_f, out_f):
        bound = 1.0 / math.sqrt(in_f)
        return jax.random.uniform(k, (out_f,), jnp.float32, -bound, bound)

    return {
        "Wr": xavier_normal(ks[0], hidden_size, input_size),
        "bWr": linear_bias(ks[1], input_size, hidden_size),
        "Ur": xavier_normal(ks[2], hidden_size, hidden_size),
        "bUr": linear_bias(ks[3], hidden_size, hidden_size),
        "W": xavier_normal(ks[4], hidden_size, input_size),
        "bW": linear_bias(ks[5], input_size, hidden_size),
        "U": xavier_normal(ks[6], hidden_size, hidden_size),
        "bU": linear_bias(ks[7], hidden_size, hidden_size),
    }


def attn_gru_reference(D, G, params):
    """Pure-JAX reference replicating the PyTorch loop exactly."""
    B, S, _ = D.shape
    H = params["U"].shape[0]
    h = jnp.zeros((B, H), jnp.float32)
    hs = []
    for t in range(S):
        fact = D[:, t, :]
        g = G[:, t][:, None]
        r = jax.nn.sigmoid(fact @ params["Wr"].T + params["bWr"]
                           + h @ params["Ur"].T + params["bUr"])
        h_tilda = jnp.tanh(fact @ params["W"].T + params["bW"]
                           + r * (h @ params["U"].T + params["bU"]))
        h = g * h_tilda + (1.0 - g) * h
        hs.append(h[:, None, :])
    return h, jnp.concatenate(hs, axis=1)


if __name__ == "__main__":
    batch, seq, hidden = 2, 8, 32
    # The original module's h_0.expand_as(sentence) implies input_size == hidden_size.
    input_size = hidden

    key = jax.random.PRNGKey(0)
    k_d, k_g, k_p = jax.random.split(key, 3)
    D = jax.random.normal(k_d, (batch, seq, input_size), jnp.float32)
    G = jax.nn.softmax(jax.random.normal(k_g, (batch, seq), jnp.float32), axis=-1)
    params = init_params(k_p, input_size, hidden)

    C, hs = attn_gru_forward(D, G, params)
    C, hs = jax.block_until_ready((C, hs))

    C_ref, hs_ref = attn_gru_reference(D, G, params)
    assert C.shape == (batch, hidden) and hs.shape == (batch, seq, hidden)
    assert jnp.allclose(C, C_ref, atol=1e-4, rtol=1e-4)
    assert jnp.allclose(hs, hs_ref, atol=1e-4, rtol=1e-4)

    print("KERNEL_OK")
</pallas_src>

<mosaic_0001>
module attributes {stable_mosaic.version = 11 : i64} {
  func.func @attn_gru_kernel(%arg0: i32, %arg1: i32, %arg2: memref<1x8x256xf32, #tpu.memory_space<vmem>>, %arg3: memref<1x8x1xf32, #tpu.memory_space<vmem>>, %arg4: memref<128x256xf32, #tpu.memory_space<vmem>>, %arg5: memref<1x128xf32, #tpu.memory_space<vmem>>, %arg6: memref<1x8x128xf32, #tpu.memory_space<vmem>>, %arg7: memref<8x128xf32, #tpu.memory_space<vmem>>) attributes {dimension_semantics = [#tpu.dimension_semantics<parallel>, #tpu.dimension_semantics<arbitrary>], iteration_bounds = array<i64: 1, 8>, scalar_prefetch = 0 : i64, scratch_operands = 1 : i64, tpu.core_type = #tpu.core_type<tc>, window_params = [{transform_indices = @transform_0, window_bounds = array<i64: 1, 8, 256>}, {transform_indices = @transform_1, window_bounds = array<i64: 1, 8, 1>}, {pipeline_mode = #tpu.pipeline_mode<synchronous>, transform_indices = @transform_2, window_bounds = array<i64: 128, 256>}, {pipeline_mode = #tpu.pipeline_mode<synchronous>, transform_indices = @transform_3, window_bounds = array<i64: 1, 128>}, {transform_indices = @transform_4, window_bounds = array<i64: 1, 8, 128>}]} {
    %c0_i32 = arith.constant 0 : i32
    %0 = arith.cmpi eq, %arg1, %c0_i32 : i32
    %1 = arith.extui %0 : i1 to i32
    %c0_i32_0 = arith.constant 0 : i32
    %2 = arith.cmpi ne, %1, %c0_i32_0 : i32
    scf.if %2 {
      %cst_18 = arith.constant 0.000000e+00 : f32
      %34 = vector.broadcast %cst_18 : f32 to vector<8x128xf32>
      %c0_19 = arith.constant 0 : index
      %c0_20 = arith.constant 0 : index
      %35 = vector.load %arg7[%c0_19, %c0_20] : memref<8x128xf32, #tpu.memory_space<vmem>>, vector<8x128xf32>
      tpu.vector_store %arg7[%c0_19, %c0_20], %34 {strides = array<i32>} : memref<8x128xf32, #tpu.memory_space<vmem>>, vector<8x128xf32>,
    } else {
    }
    %c0 = arith.constant 0 : index
    %c0_1 = arith.constant 0 : index
    %3 = vector.load %arg7[%c0, %c0_1] : memref<8x128xf32, #tpu.memory_space<vmem>>, vector<8x128xf32>
    %c0_2 = arith.constant 0 : index
    %c0_3 = arith.constant 0 : index
    %4 = vector.load %arg4[%c0_2, %c0_3] : memref<128x256xf32, #tpu.memory_space<vmem>>, vector<128x256xf32>
    %cst = arith.constant dense<0.000000e+00> : vector<8x256xf32>
    %5 = tpu.matmul %3, %4, %cst {dimension_numbers = #tpu.dot_dimension_numbers<[1], [0], [0], [1], [0, 0, 1, 1], [], []>} : vector<8x128xf32>, vector<128x256xf32>, vector<8x256xf32> -> vector<8x256xf32>
    %c0_4 = arith.constant 0 : index
    %c0_5 = arith.constant 0 : index
    %c0_6 = arith.constant 0 : index
    %6 = vector.load %arg2[%c0_4, %c0_5, %c0_6] : memref<1x8x256xf32, #tpu.memory_space<vmem>>, vector<1x8x256xf32>
    %7 = vector.shape_cast %6 : vector<1x8x256xf32> to vector<8x256xf32>
    %8 = vector.extract_strided_slice %7 {offsets = [0, 0], sizes = [8, 128], strides = [1, 1]} : vector<8x256xf32> to vector<8x128xf32>
    %9 = vector.extract_strided_slice %5 {offsets = [0, 0], sizes = [8, 128], strides = [1, 1]} : vector<8x256xf32> to vector<8x128xf32>
    %10 = arith.addf %8, %9 : vector<8x128xf32>
    %11 = arith.negf %10 : vector<8x128xf32>
    %12 = math.exp %11 : vector<8x128xf32>
    %cst_7 = arith.constant 1.000000e+00 : f32
    %13 = vector.broadcast %cst_7 : f32 to vector<8x128xf32>
    %14 = arith.addf %13, %12 : vector<8x128xf32>
    %15 = arith.divf %13, %14 : vector<8x128xf32>
    %16 = vector.extract_strided_slice %7 {offsets = [0, 128], sizes = [8, 128], strides = [1, 1]} : vector<8x256xf32> to vector<8x128xf32>
    %17 = vector.extract_strided_slice %5 {offsets = [0, 128], sizes = [8, 128], strides = [1, 1]} : vector<8x256xf32> to vector<8x128xf32>
    %c0_8 = arith.constant 0 : index
    %c0_9 = arith.constant 0 : index
    %18 = vector.load %arg5[%c0_8, %c0_9] : memref<1x128xf32, #tpu.memory_space<vmem>>, vector<1x128xf32>
    %19 = vector.broadcast %18 : vector<1x128xf32> to vector<8x128xf32>
    %20 = arith.addf %17, %19 : vector<8x128xf32>
    %21 = arith.mulf %15, %20 : vector<8x128xf32>
    %22 = arith.addf %16, %21 : vector<8x128xf32>
    %23 = math.tanh %22 : vector<8x128xf32>
    %c0_10 = arith.constant 0 : index
    %c0_11 = arith.constant 0 : index
    %c0_12 = arith.constant 0 : index
    %24 = vector.load %arg3[%c0_10, %c0_11, %c0_12] : memref<1x8x1xf32, #tpu.memory_space<vmem>>, vector<1x8x1xf32>
    %25 = vector.shape_cast %24 : vector<1x8x1xf32> to vector<8x1xf32>
    %26 = arith.subf %23, %3 : vector<8x128xf32>
    %27 = vector.broadcast %25 : vector<8x1xf32> to vector<8x128xf32>
    %28 = arith.mulf %27, %26 : vector<8x128xf32>
    %29 = arith.addf %3, %28 : vector<8x128xf32>
    %c0_13 = arith.constant 0 : index
    %c0_14 = arith.constant 0 : index
    %c0_15 = arith.constant 0 : index
    %30 = vector.load %arg6[%c0_13, %c0_14, %c0_15] : memref<1x8x128xf32, #tpu.memory_space<vmem>>, vector<1x8x128xf32>
    %31 = vector.shape_cast %30 : vector<1x8x128xf32> to vector<8x128xf32>
    %32 = vector.shape_cast %29 : vector<8x128xf32> to vector<1x8x128xf32>
    tpu.vector_store %arg6[%c0_13, %c0_14, %c0_15], %32 {strides = array<i32>} : memref<1x8x128xf32, #tpu.memory_space<vmem>>, vector<1x8x128xf32>,
    %c0_16 = arith.constant 0 : index
    %c0_17 = arith.constant 0 : index
    %33 = vector.load %arg7[%c0_16, %c0_17] : memref<8x128xf32, #tpu.memory_space<vmem>>, vector<8x128xf32>
    tpu.vector_store %arg7[%c0_16, %c0_17], %29 {strides = array<i32>} : memref<8x128xf32, #tpu.memory_space<vmem>>, vector<8x128xf32>,
    return
  }
  func.func @transform_0(%arg0: i32, %arg1: i32) -> (i32, i32, i32) {
    %c0_i32 = arith.constant 0 : i32
    %c0_i32_0 = arith.constant 0 : i32
    return %arg1, %arg0, %c0_i32 : i32, i32, i32
  }
  func.func @transform_1(%arg0: i32, %arg1: i32) -> (i32, i32, i32) {
    %c0_i32 = arith.constant 0 : i32
    %c0_i32_0 = arith.constant 0 : i32
    return %arg1, %arg0, %c0_i32 : i32, i32, i32
  }
  func.func @transform_2(%arg0: i32, %arg1: i32) -> (i32, i32) {
    %c0_i32 = arith.constant 0 : i32
    %c0_i32_0 = arith.constant 0 : i32
    %c0_i32_1 = arith.constant 0 : i32
    return %c0_i32, %c0_i32_0 : i32, i32
  }
  func.func @transform_3(%arg0: i32, %arg1: i32) -> (i32, i32) {
    %c0_i32 = arith.constant 0 : i32
    %c0_i32_0 = arith.constant 0 : i32
    %c0_i32_1 = arith.constant 0 : i32
    return %c0_i32, %c0_i32_0 : i32, i32
  }
  func.func @transform_4(%arg0: i32, %arg1: i32) -> (i32, i32, i32) {
    %c0_i32 = arith.constant 0 : i32
    %c0_i32_0 = arith.constant 0 : i32
    return %arg1, %arg0, %c0_i32 : i32, i32, i32
  }
}

</mosaic_0001>

<llo_original>
// kernel: tpu_custom_call.1
$region0: #{tpu_custom_call.1}
  #allocation0 [shape = 'u32[]', space=smem, size = 0x4, offset = 0x4, fixed_abs, tag = 'smem constant byte address 0x4 - core index']
  #allocation1 [shape = 'u32[144,128]{1,0:T(1,128)}', space=vmem, size = 0x12000, scoped, tag = 'internal scratch']
  #allocation2 [shape = 'f32[8,128]{1,0:T(8,128)}', space=vmem, size = 0x1000, scoped, tag = 'scratch operand']
  %s0 = inlined_call_operand.hbm [shape: f32[8,8,256], index: 0, kind: input, shape index: {}]
  %s1 = inlined_call_operand.vmem [shape: f32[8,8,1], index: 1, kind: input, shape index: {}]
  %s2 = inlined_call_operand.hbm [shape: f32[128,256], index: 2, kind: input, shape index: {}]
  %s3 = inlined_call_operand.vmem [shape: f32[1,128], index: 3, kind: input, shape index: {}]
  %s4 = inlined_call_operand.hbm [shape: f32[8,8,128], index: 4, kind: output, shape index: {}]
  %s5 = sld [smem:[#allocation0]]
  $region61: #{tpu_custom_call.1} parent=0
    _
  %s7 = ssub.s32 1, %s5
  %s8 = scalar_select 0, %s7, %s5
  $region1: #{tpu_custom_call.1} parent=0
    #allocation3 [shape = 'u8[16384]{0}', space=vmem, size = 0x4000, scoped, tag = 'input window, operand 0']
    #allocation4 [shape = 's32[2]{0}', space=sflag, size = 0x8, scoped, tag = 'scoped memory for tpu_custom_call.1']
    #allocation5 [shape = 's32[2]{0}', space=sflag, size = 0x8, scoped, tag = 'scoped memory for tpu_custom_call.1']
    #allocation6 [shape = 'u8[131072]{0}', space=vmem, size = 0x20000, scoped, tag = 'input window, operand 2, single buffered']
    #allocation7 [shape = 's32[1]{0}', space=sflag, size = 0x4, scoped, tag = 'scoped memory for tpu_custom_call.1']
    #allocation8 [shape = 'u8[8192]{0}', space=vmem, size = 0x2000, scoped, tag = 'output window, operand 0']
    %9 = vsyncpa [#allocation4], 0
    %s10 = scalar_lea.sflag [#allocation4], 1
    %11 = vsyncpa %s10, 0
    %12 = vsyncpa [#allocation7], 0
    %13 = vsyncpa [#allocation5], 0
    %s14 = scalar_lea.sflag [#allocation5], 1
    %15 = vsyncpa %s14, 0
    loop: start=0, step=1, limit=10
    $region2: #{tpu_custom_call.1} parent=1 // loop_pre_header
      _
    $region3: #{tpu_custom_call.1} parent=1 // loop_header
      %s17 = sphi 0, %s21
      %p18 = scmp.ge.s32.totalorder %s17, 10
      %s24 = sphi 0, %s36
      %s25 = sphi 0, %s32
      %s26 = sphi 0, %s24
      %s27 = sphi 0, %s25
      %s28 = sphi 0, %s26
      %s29 = sphi 0, %s27
      %s41 = sphi 0, %s43
      %s44 = sphi 0, %s41
      %s45 = sphi 0, %s44
      %s61 = sphi 0, %s45
      %s69 = sphi 0, %s71
      %s72 = sphi 0, %s69
      %s73 = sphi 0, %s72
      %s89 = sphi 0, %s73
      %s93 = sphi 0, %s93
      %s95 = sphi 0, %s93
      %s96 = sphi 0, %s95
      %s110 = sphi 0, %s96
      %s114 = sphi 0, %s114
      %s116 = sphi 0, %s114
      %s117 = sphi 0, %s116
      %s131 = sphi 0, %s117
      %s139 = sphi 0, %s141
      %s142 = sphi 0, %s139
      %s143 = sphi 0, %s142
      %s159 = sphi 0, %s143
    $region4: #{tpu_custom_call.1} parent=1 // loop_header_branch
      %20 = sbr.rel (%p18) target = $region8
    $region5: #{tpu_custom_call.1} parent=1 // loop_body
      %s22 = ssub.s32 %s17, 1
      %s23 = ssub.s32 %s17, 2
      %s30 = sadd.s32 1, %s25
      %p31 = scmp.ge.s32.totalorder %s30, 8
      %s32 = scalar_select %p31, 0, %s30
      %s33 = sadd.s32 1, %s24
      %s34 = scalar_select %p31, %s33, %s24
      %p35 = scmp.ge.s32.totalorder %s34, 1
      %s36 = scalar_select %p35, 0, %s34
      %s37 = ssub.s32 %s25, %s32
      %s38 = ssub.s32 %s24, %s36
      %s39 = sor.u32 %s37, %s38
      %p40 = scmp.eq.s32.totalorder %s39, 0
      %s42 = sadd.s32 %s41, 1
      %s43 = scalar_select %p40, %s41, %s42
      %p46 = pneg %p40
      %p47 = scmp.eq.s32.totalorder %s17, 7
      %p48 = por %p46, %p47
      %p49 = scmp.ne.s32.totalorder %s41, %s44
      %p50 = scmp.eq.s32.totalorder %s17, 0
      %p51 = por %p49, %p50
      %p52 = scmp.ne.s32.totalorder %s41, %s44
      %p53 = scmp.eq.s32.totalorder %s22, 7
      %p54 = por %p52, %p53
      %p55 = scmp.ne.s32.totalorder %s44, %s45
      %p56 = scmp.eq.s32.totalorder %s22, 0
      %p57 = por %p55, %p56
      %p58 = scmp.ne.s32.totalorder %s44, %s45
      %p59 = scmp.eq.s32.totalorder %s23, 7
      %p60 = por %p58, %p59
      %p62 = scmp.ne.s32.totalorder %s45, %s61
      %p63 = scmp.eq.s32.totalorder %s23, 0
      %p64 = por %p62, %p63
      %s65 = ssub.s32 %s25, %s32
      %s66 = ssub.s32 %s24, %s36
      %s67 = sor.u32 %s65, %s66
      %p68 = scmp.eq.s32.totalorder %s67, 0
      %s70 = sadd.s32 %s69, 1
      %s71 = scalar_select %p68, %s69, %s70
      %p74 = pneg %p68
      %p75 = scmp.eq.s32.totalorder %s17, 7
      %p76 = por %p74, %p75
      %p77 = scmp.ne.s32.totalorder %s69, %s72
      %p78 = scmp.eq.s32.totalorder %s17, 0
      %p79 = por %p77, %p78
      %p80 = scmp.ne.s32.totalorder %s69, %s72
      %p81 = scmp.eq.s32.totalorder %s22, 7
      %p82 = por %p80, %p81
      %p83 = scmp.ne.s32.totalorder %s72, %s73
      %p84 = scmp.eq.s32.totalorder %s22, 0
      %p85 = por %p83, %p84
      %p86 = scmp.ne.s32.totalorder %s72, %s73
      %p87 = scmp.eq.s32.totalorder %s23, 7
      %p88 = por %p86, %p87
      %p90 = scmp.ne.s32.totalorder %s73, %s89
      %p91 = scmp.eq.s32.totalorder %s23, 0
      %p92 = por %p90, %p91
      %s94 = sadd.s32 %s93, 1
      %p97 = scmp.eq.s32.totalorder %s17, 7
      %p98 = scmp.ne.s32.totalorder %s93, %s95
      %p99 = scmp.eq.s32.totalorder %s17, 0
      %p100 = por %p98, %p99
      %p101 = scmp.ne.s32.totalorder %s93, %s95
      %p102 = scmp.eq.s32.totalorder %s22, 7
      %p103 = por %p101, %p102
      %p104 = scmp.ne.s32.totalorder %s95, %s96
      %p105 = scmp.eq.s32.totalorder %s22, 0
      %p106 = por %p104, %p105
      %p107 = scmp.ne.s32.totalorder %s95, %s96
      %p108 = scmp.eq.s32.totalorder %s23, 7
      %p109 = por %p107, %p108
      %p111 = scmp.ne.s32.totalorder %s96, %s110
      %p112 = scmp.eq.s32.totalorder %s23, 0
      %p113 = por %p111, %p112
      %s115 = sadd.s32 %s114, 1
      %p118 = scmp.eq.s32.totalorder %s17, 7
      %p119 = scmp.ne.s32.totalorder %s114, %s116
      %p120 = scmp.eq.s32.totalorder %s17, 0
      %p121 = por %p119, %p120
      %p122 = scmp.ne.s32.totalorder %s114, %s116
      %p123 = scmp.eq.s32.totalorder %s22, 7
      %p124 = por %p122, %p123
      %p125 = scmp.ne.s32.totalorder %s116, %s117
      %p126 = scmp.eq.s32.totalorder %s22, 0
      %p127 = por %p125, %p126
      %p128 = scmp.ne.s32.totalorder %s116, %s117
      %p129 = scmp.eq.s32.totalorder %s23, 7
      %p130 = por %p128, %p129
      %p132 = scmp.ne.s32.totalorder %s117, %s131
      %p133 = scmp.eq.s32.totalorder %s23, 0
      %p134 = por %p132, %p133
      %s135 = ssub.s32 %s25, %s32
      %s136 = ssub.s32 %s24, %s36
      %s137 = sor.u32 %s135, %s136
      %p138 = scmp.eq.s32.totalorder %s137, 0
      %s140 = sadd.s32 %s139, 1
      %s141 = scalar_select %p138, %s139, %s140
      %p144 = pneg %p138
      %p145 = scmp.eq.s32.totalorder %s17, 7
      %p146 = por %p144, %p145
      %p147 = scmp.ne.s32.totalorder %s139, %s142
      %p148 = scmp.eq.s32.totalorder %s17, 0
      %p149 = por %p147, %p148
      %p150 = scmp.ne.s32.totalorder %s139, %s142
      %p151 = scmp.eq.s32.totalorder %s22, 7
      %p152 = por %p150, %p151
      %p153 = scmp.ne.s32.totalorder %s142, %s143
      %p154 = scmp.eq.s32.totalorder %s22, 0
      %p155 = por %p153, %p154
      %p156 = scmp.ne.s32.totalorder %s142, %s143
      %p157 = scmp.eq.s32.totalorder %s23, 7
      %p158 = por %p156, %p157
      %p160 = scmp.ne.s32.totalorder %s143, %s159
      %p161 = scmp.eq.s32.totalorder %s23, 0
      %p162 = por %p160, %p161
      %p163 = scmp.le.s32.totalorder 1, %s17
      %p164 = scmp.lt.s32.totalorder %s17, 9
      %p165 = pnand %p163, %p164
      %p166 = pneg %p165
      // Predicated region
      $region9: #{tpu_custom_call.1} parent=5 // pred_check
        _
      $region10: #{tpu_custom_call.1} parent=5 // pred_check_branch
        %168 = sbr.rel (%p165) target = $region12
      $region11: #{tpu_custom_call.1} parent=5 // pred_region
        %s169 = ssub.s32 %s17, 1
        // Predicated region
        $region13: #{tpu_custom_call.1} parent=11 // pred_check
          %p170 = pneg %p106
        $region14: #{tpu_custom_call.1} parent=11 // pred_check_branch
          %172 = sbr.rel (%p170) target = $region16
        $region15: #{tpu_custom_call.1} parent=11 // pred_region
          %s174 = ssub.s32 4096, 4096
          %175 = vsyncadd [#allocation7], %s174
          %s176 = sshll.u32 [#allocation6], 4
          %s177 = int_to_ptr.vmem [resolvable:$true] %s176
          %182 = dma.hbm_to_vmem [thread:$0]  %s2, 4096, %s177, [#allocation7], 256, 256, 16
        $region16: #{tpu_custom_call.1} parent=11 // pred_fallthru
          _
        // Predicated region
        $region17: #{tpu_custom_call.1} parent=11 // pred_check
          %p183 = pneg %p127
        $region18: #{tpu_custom_call.1} parent=11 // pred_check_branch
          %185 = sbr.rel (%p183) target = $region20
        $region19: #{tpu_custom_call.1} parent=11 // pred_region
          _
        $region20: #{tpu_custom_call.1} parent=11 // pred_fallthru
          _
      $region12: #{tpu_custom_call.1} parent=5 // pred_fallthru
        _
      %p186 = scmp.lt.s32.totalorder %s17, 8
      // Predicated region
      $region21: #{tpu_custom_call.1} parent=5 // pred_check
        %p187 = pneg %p186
      $region22: #{tpu_custom_call.1} parent=5 // pred_check_branch
        %189 = sbr.rel (%p187) target = $region24
      $region23: #{tpu_custom_call.1} parent=5 // pred_region
        // Predicated region
        $region25: #{tpu_custom_call.1} parent=23 // pred_check
          %p190 = pneg %p51
        $region26: #{tpu_custom_call.1} parent=23 // pred_check_branch
          %192 = sbr.rel (%p190) target = $region28
        $region27: #{tpu_custom_call.1} parent=23 // pred_region
          %s193 = sand.u32 %s41, 1
          %s194 = scalar_lea.sflag [#allocation4], %s193
          %s195 = sand.u32 %s41, 1
          %s196 = smul.addr %s195, 16
          %s197 = scalar_lea.vmem [#allocation3], %s196
          %s199 = ssub.s32 256, 256
          %200 = vsyncadd %s194, %s199
          %s201 = smul.addr %s24, 2
          %s202 = smul.addr %s25, 2
          %s203 = sadd.s32 %s201, %s202
          %s204 = smul.addr %s203, 128
          %s205 = scalar_lea.hbm %s0, %s204
          %s207 = sshll.u32 %s197, 4
          %s208 = int_to_ptr.vmem [resolvable:$true] %s207
          %210 = dma.hbm_to_vmem [thread:$0]  %s205, 256, %s208, %s194
        $region28: #{tpu_custom_call.1} parent=23 // pred_fallthru
          _
        // Predicated region
        $region29: #{tpu_custom_call.1} parent=23 // pred_check
          %p211 = pneg %p79
        $region30: #{tpu_custom_call.1} parent=23 // pred_check_branch
          %213 = sbr.rel (%p211) target = $region32
        $region31: #{tpu_custom_call.1} parent=23 // pred_region
          %p214 = scmp.lt.s32.totalorder %s25, 7
          %s215 = scalar_select %p214, %s25, 7
          %p216 = scmp.lt.s32.totalorder %s24, 0
          %s217 = scalar_select %p216, %s24, 0
          %s218 = sadd.s32 %s217, %s215
          %s219 = smul.addr %s218, 8
          %s220 = scalar_lea.vmem %s1, %s219
        $region32: #{tpu_custom_call.1} parent=23 // pred_fallthru
          _
      $region24: #{tpu_custom_call.1} parent=5 // pred_fallthru
        _
      %p221 = scmp.le.s32.totalorder 1, %s17
      %p222 = scmp.lt.s32.totalorder %s17, 9
      %p223 = pnand %p221, %p222
      %p224 = pneg %p223
      // Predicated region
      $region33: #{tpu_custom_call.1} parent=5 // pred_check
        _
      $region34: #{tpu_custom_call.1} parent=5 // pred_check_branch
        %226 = sbr.rel (%p223) target = $region36
      $region35: #{tpu_custom_call.1} parent=5 // pred_region
        %s227 = ssub.s32 %s17, 1
        %s228 = sand.u32 %s44, 1
        %s229 = scalar_lea.sflag [#allocation4], %s228
        %s230 = sand.u32 %s44, 1
        %s231 = smul.addr %s230, 16
        %s232 = scalar_lea.vmem [#allocation3], %s231
        // Predicated region
        $region37: #{tpu_custom_call.1} parent=35 // pred_check
          %p233 = pneg %p57
        $region38: #{tpu_custom_call.1} parent=35 // pred_check_branch
          %235 = sbr.rel (%p233) target = $region40
        $region39: #{tpu_custom_call.1} parent=35 // pred_region
          %236 = dma.done %s229, 256
        $region40: #{tpu_custom_call.1} parent=35 // pred_fallthru
          _
        // Predicated region
        $region41: #{tpu_custom_call.1} parent=35 // pred_check
          %p237 = pneg %p106
        $region42: #{tpu_custom_call.1} parent=35 // pred_check_branch
          %239 = sbr.rel (%p237) target = $region44
        $region43: #{tpu_custom_call.1} parent=35 // pred_region
          %240 = dma.done [#allocation7], 4096
        $region44: #{tpu_custom_call.1} parent=35 // pred_fallthru
          _
        %s241 = sand.u32 %s44, 1
        %s242 = scalar_lea.sflag [#allocation4], %s241
        %s243 = sand.u32 %s44, 1
        %s244 = smul.addr %s243, 16
        %s245 = scalar_lea.vmem [#allocation3], %s244
        %p246 = pneg %p57
        %p247 = pneg %p54
        %p248 = scmp.lt.s32.totalorder %s27, 7
        %s249 = scalar_select %p248, %s27, 7
        %p250 = scmp.lt.s32.totalorder %s26, 0
        %s251 = scalar_select %p250, %s26, 0
        %s252 = sadd.s32 %s251, %s249
        %s253 = smul.addr %s252, 8
        %s254 = scalar_lea.vmem %s1, %s253
        %p255 = pneg %p85
        %p256 = pneg %p82
        %p257 = pneg %p106
        %p258 = pneg %p103
        %p259 = pneg %p127
        %p260 = pneg %p124
        %p261 = pneg %p155
        %p262 = pneg %p152
        %s263 = sand.u32 %s142, 1
        %s264 = scalar_lea.sflag [#allocation5], %s263
        %s265 = sand.u32 %s142, 1
        %s266 = smul.addr %s265, 8
        %s267 = scalar_lea.vmem [#allocation8], %s266
        %p268 = scmp.lt.s32.totalorder %s27, 7
        %s269 = scalar_select %p268, %s27, 7
        %p270 = scmp.lt.s32.totalorder %s26, 0
        %s271 = scalar_select %p270, %s26, 0
        %s272 = sadd.s32 %s271, %s269
        %s273 = smul.addr %s272, 8
        %s274 = scalar_lea.vmem %s1, %s273
        %p275 = scmp.eq.s32.totalorder %s27, 0
        // Predicated region
        $region45: #{tpu_custom_call.1} parent=35 // pred_check
          %p276 = pneg %p275
        $region46: #{tpu_custom_call.1} parent=35 // pred_check_branch
          %278 = sbr.rel (%p276) target = $region48
        $region47: #{tpu_custom_call.1} parent=35 // pred_region
          %279 = vst [vmem:[#allocation2] sm:$0xff] 0.0
        $region48: #{tpu_custom_call.1} parent=35 // pred_fallthru
          _
        %v280 = vld [vmem:[#allocation2] sm:$0xff]
        %v281 = vld [vmem:[#allocation6] sm:$0xff]
        %v282 = vld [vmem:[#allocation6 + $0x8] sm:$0xff]
        %v283 = vld [vmem:[#allocation6 + $0x10] sm:$0xff]
        %v284 = vld [vmem:[#allocation6 + $0x18] sm:$0xff]
        %v285 = vld [vmem:[#allocation6 + $0x20] sm:$0xff]
        %v286 = vld [vmem:[#allocation6 + $0x28] sm:$0xff]
        %v287 = vld [vmem:[#allocation6 + $0x30] sm:$0xff]
        %v288 = vld [vmem:[#allocation6 + $0x38] sm:$0xff]
        %v289 = vld [vmem:[#allocation6 + $0x40] sm:$0xff]
        %v290 = vld [vmem:[#allocation6 + $0x48] sm:$0xff]
        %v291 = vld [vmem:[#allocation6 + $0x50] sm:$0xff]
        %v292 = vld [vmem:[#allocation6 + $0x58] sm:$0xff]
        %v293 = vld [vmem:[#allocation6 + $0x60] sm:$0xff]
        %v294 = vld [vmem:[#allocation6 + $0x68] sm:$0xff]
        %v295 = vld [vmem:[#allocation6 + $0x70] sm:$0xff]
        %v296 = vld [vmem:[#allocation6 + $0x78] sm:$0xff]
        %v297 = vld [vmem:[#allocation6 + $0x80] sm:$0xff]
        %v298 = vld [vmem:[#allocation6 + $0x88] sm:$0xff]
        %v299 = vld [vmem:[#allocation6 + $0x90] sm:$0xff]
        %v300 = vld [vmem:[#allocation6 + $0x98] sm:$0xff]
        %v301 = vld [vmem:[#allocation6 + $0xa0] sm:$0xff]
        %v302 = vld [vmem:[#allocation6 + $0xa8] sm:$0xff]
        %v303 = vld [vmem:[#allocation6 + $0xb0] sm:$0xff]
        %v304 = vld [vmem:[#allocation6 + $0xb8] sm:$0xff]
        %v305 = vld [vmem:[#allocation6 + $0xc0] sm:$0xff]
        %v306 = vld [vmem:[#allocation6 + $0xc8] sm:$0xff]
        %v307 = vld [vmem:[#allocation6 + $0xd0] sm:$0xff]
        %v308 = vld [vmem:[#allocation6 + $0xd8] sm:$0xff]
        %v309 = vld [vmem:[#allocation6 + $0xe0] sm:$0xff]
        %v310 = vld [vmem:[#allocation6 + $0xe8] sm:$0xff]
        %v311 = vld [vmem:[#allocation6 + $0xf0] sm:$0xff]
        %v312 = vld [vmem:[#allocation6 + $0xf8] sm:$0xff]
        %313 = vmatprep.subr.mxu0 %v282
        %314 = vmatpush1.msra.mxu0 %v281
        %315 = vmatprep.subr.mxu0 %v284
        %316 = vmatpush1.msra.mxu0 %v283
        %317 = vmatprep.subr.mxu0 %v286
        %318 = vmatpush1.msra.mxu0 %v285
        %319 = vmatprep.subr.mxu0 %v288
        %320 = vmatpush1.msra.mxu0 %v287
        %321 = vmatprep.subr.mxu0 %v290
        %322 = vmatpush1.msra.mxu0 %v289
        %323 = vmatprep.subr.mxu0 %v292
        %324 = vmatpush1.msra.mxu0 %v291
        %325 = vmatprep.subr.mxu0 %v294
        %326 = vmatpush1.msra.mxu0 %v293
        %327 = vmatprep.subr.mxu0 %v296
        %328 = vmatpush1.msra.mxu0 %v295
        %329 = vmatprep.subr.mxu0 %v298
        %330 = vmatpush1.msra.mxu0 %v297
        %331 = vmatprep.subr.mxu0 %v300
        %332 = vmatpush1.msra.mxu0 %v299
        %333 = vmatprep.subr.mxu0 %v302
        %334 = vmatpush1.msra.mxu0 %v301
        %335 = vmatprep.subr.mxu0 %v304
        %336 = vmatpush1.msra.mxu0 %v303
        %337 = vmatprep.subr.mxu0 %v306
        %338 = vmatpush1.msra.mxu0 %v305
        %339 = vmatprep.subr.mxu0 %v308
        %340 = vmatpush1.msra.mxu0 %v307
        %341 = vmatprep.subr.mxu0 %v310
        %342 = vmatpush1.msra.mxu0 %v309
        %343 = vmatprep.subr.mxu0 %v312
        %344 = vmatpush1.msra.mxu0 %v311
        %345 = vmatprep.subr.mxu0 0.0
        %346 = vmatpush1.msra.mxu0 0.0
        %347 = vmatprep.subr.mxu0 0.0
        %348 = vmatpush1.msra.mxu0 0.0
        %349 = vmatprep.subr.mxu0 0.0
        %350 = vmatpush1.msra.mxu0 0.0
        %351 = vmatprep.subr.mxu0 0.0
        %352 = vmatpush1.msra.mxu0 0.0
        %353 = vmatprep.subr.mxu0 0.0
        %354 = vmatpush1.msra.mxu0 0.0
        %355 = vmatprep.subr.mxu0 0.0
        %356 = vmatpush1.msra.mxu0 0.0
        %357 = vmatprep.subr.mxu0 0.0
        %358 = vmatpush1.msra.mxu0 0.0
        %359 = vmatprep.subr.mxu0 0.0
        %360 = vmatpush1.msra.mxu0 0.0
        %361 = vmatprep.subr.mxu0 0.0
        %362 = vmatpush1.msra.mxu0 0.0
        %363 = vmatprep.subr.mxu0 0.0
        %364 = vmatpush1.msra.mxu0 0.0
        %365 = vmatprep.subr.mxu0 0.0
        %366 = vmatpush1.msra.mxu0 0.0
        %367 = vmatprep.subr.mxu0 0.0
        %368 = vmatpush1.msra.mxu0 0.0
        %369 = vmatprep.subr.mxu0 0.0
        %370 = vmatpush1.msra.mxu0 0.0
        %371 = vmatprep.subr.mxu0 0.0
        %372 = vmatpush1.msra.mxu0 0.0
        %373 = vmatprep.subr.mxu0 0.0
        %374 = vmatpush1.msra.mxu0 0.0
        %375 = vmatprep.subr.mxu0 0.0
        %376 = vmatpush1.msra.mxu0 0.0
        %377 = vmatprep.mubr.f32.mxu0 0.0
        %378 = vmatmul.mubr.f32.gmra.mrb[0].mxu0 %v280
        %v379 = vpop.f32.mrb[0].mxu0
        %v380 = vadd.f32 0.0, %v379
        %v381 = vpop.f32.mrb[0].mxu0
        %v382 = vadd.f32 0.0, %v381
        %383 = vdwg.mxu0
        %v384 = vld [vmem:[%s232] sm:$0xff]
        %v385 = vld [vmem:[%s232 + $0x8] sm:$0xff]
        %v386 = vadd.f32 %v384, %v380
        %v387 = vxor.u32 %v386, 2147483648
        %v388 = vmul.f32 %v387, 1.442695
        %v389 = vpow.pop %v388
        %v390 = vadd.f32 %v389, 1.0
        %v391 = vrcp.pop %v390
        %v392 = vmul.f32 1.0, %v391
        %v393 = vld [vmem:[%s3] sm:$0x1]
        %v395 = vlaneseq
        %v396 = vshrl.u32 %v395, 7
        %v397 = vsub.s32 0, %v396
        %v398 = vrot.slane %v393, %v397
        %v400 = vadd.f32 %v382, %v398
        %v401 = vmul.f32 %v392, %v400
        %v402 = vadd.f32 %v385, %v401
        %v403 = vtanh.pop %v402
        %v404 = vld [vmem:[%s274] sm:$0xff]
        %v405 = vsub.f32 %v403, %v280
        %407 = vset.pattern.permute.xlu0 0
        %408 = vperm.xlu0 %407, %v404
        %v409 = vpop.permute.xlu0 %408
        %v411 = vmul.f32 %v409, %v405
        %v412 = vadd.f32 %v280, %v411
        %413 = vst [vmem:[%s267] sm:$0xff] %v412
        %414 = vst [vmem:[#allocation2] sm:$0xff] %v412
        %s415 = sand.u32 %s142, 1
        %s416 = scalar_lea.sflag [#allocation5], %s415
        %s417 = sand.u32 %s142, 1
        %s418 = smul.addr %s417, 8
        %s419 = scalar_lea.vmem [#allocation8], %s418
        // Predicated region
        $region49: #{tpu_custom_call.1} parent=35 // pred_check
          %p420 = pneg %p152
        $region50: #{tpu_custom_call.1} parent=35 // pred_check_branch
          %422 = sbr.rel (%p420) target = $region52
        $region51: #{tpu_custom_call.1} parent=35 // pred_region
          %s424 = ssub.s32 128, 128
          %425 = vsyncadd %s416, %s424
          %s426 = sadd.s32 %s26, %s27
          %s427 = smul.addr %s426, 128
          %s428 = scalar_lea.hbm %s4, %s427
          %s430 = sshll.u32 %s419, 4
          %s431 = int_to_ptr.vmem [resolvable:$true] %s430
          %433 = dma.vmem_to_hbm [thread:$0]  %s431, 128, %s428, %s416
        $region52: #{tpu_custom_call.1} parent=35 // pred_fallthru
          _
      $region36: #{tpu_custom_call.1} parent=5 // pred_fallthru
        _
      %p434 = scmp.le.s32.totalorder 2, %s17
      // Predicated region
      $region53: #{tpu_custom_call.1} parent=5 // pred_check
        %p435 = pneg %p434
      $region54: #{tpu_custom_call.1} parent=5 // pred_check_branch
        %437 = sbr.rel (%p435) target = $region56
      $region55: #{tpu_custom_call.1} parent=5 // pred_region
        %s438 = ssub.s32 %s17, 2
        // Predicated region
        $region57: #{tpu_custom_call.1} parent=55 // pred_check
          %p439 = pneg %p158
        $region58: #{tpu_custom_call.1} parent=55 // pred_check_branch
          %441 = sbr.rel (%p439) target = $region60
        $region59: #{tpu_custom_call.1} parent=55 // pred_region
          %s442 = sand.u32 %s143, 1
          %s443 = scalar_lea.sflag [#allocation5], %s442
          %s444 = sand.u32 %s143, 1
          %s445 = smul.addr %s444, 8
          %s446 = scalar_lea.vmem [#allocation8], %s445
          %447 = dma.done %s443, 128
        $region60: #{tpu_custom_call.1} parent=55 // pred_fallthru
          _
      $region56: #{tpu_custom_call.1} parent=5 // pred_fallthru
        _
    $region6: #{tpu_custom_call.1} parent=1 // loop_footer
      %s21 = sadd.s32 1, %s17
    $region7: #{tpu_custom_call.1} parent=1 // loop_footer_branch
      %16 = sbr.rel target = $region3
    $region8: #{tpu_custom_call.1} parent=1 // loop_exit
      _
    %448 = vsyncpa [#allocation4], 1
    %s449 = scalar_lea.sflag [#allocation4], 1
    %450 = vsyncpa %s449, 1
    %451 = vsyncpa [#allocation7], 1
    %452 = vsyncpa [#allocation5], 1
    %s453 = scalar_lea.sflag [#allocation5], 1
    %454 = vsyncpa %s453, 1

</llo_original>
